<compile_context>
chip_gen: v6e
topology: v6e:2x2x1
jax: 0.10.0
libtpu: 0.0.40
codegen_flags: <defaults>
</compile_context>

<pallas_src>
import math

import jax
import jax.numpy as jnp
from jax.experimental import pallas as pl
from jax.experimental.pallas import tpu as pltpu

_EPS = 1e-12  # torch F.normalize eps


def _round_up(x, n):
    return ((x + n - 1) // n) * n


def _vmem_limit_bytes():
    """Generation-aware scoped-VMEM limit (~3/4 of physical VMEM)."""
    try:
        cap = int(getattr(pltpu.get_tpu_info(), "vmem_capacity_bytes",
                          64 * 1024 * 1024))
    except Exception:  # interpret mode / query failure -> conservative default
        cap = 64 * 1024 * 1024
    # ~96 MiB on v5e/v6e (128 MiB physical), ~48 MiB on v7x (64 MiB physical)
    return (cap * 3) // 4


def _choose_tn(e, bp, vmem_limit, w_itemsize=2, n_wbuf=2):
    """Largest 128-multiple class tile fitting the VMEM budget.

    Per-step footprint (bytes):
      fea (resident, double-buffered f32)          : 2 * bp*e*4
      weight stream (n_wbuf buffers, bf16)         : n_wbuf * e*tn*w_itemsize
      in-kernel f32 weight temporaries (~2 copies) : 2 * e*tn*4
      out (double-buffered) + cos/sine/phi temps   : ~6 * bp*tn*4
    """
    budget = int(vmem_limit * 0.8)              # headroom for compiler scratch
    fixed = 2 * bp * e * 4 + (64 << 10)
    per_tn = n_wbuf * e * w_itemsize + 2 * e * 4 + 6 * bp * 4
    avail = max(budget - fixed, 0)
    return max(128, (avail // per_tn) // 128 * 128)


def arcface_logits(fea, weight, label, *, s, m, easy_margin, tn=None,
                   mxu_bf16=False, weight_stream_dtype=jnp.bfloat16):
    """ArcFace margin logits: s * (one_hot*phi + (1-one_hot)*cosine).

    fea:    (B, E)  float (any width; normalized in f32 in the wrapper)
    weight: (C, E)  float32, torch Parameter layout
    label:  (B,)    int class ids
    returns (B, C) float32
    """
    B, E = fea.shape
    C, E2 = weight.shape
    assert E == E2

    cos_m, sin_m = math.cos(m), math.sin(m)
    th = math.cos(math.pi - m)
    mm = math.sin(math.pi - m) * m

    Bp = _round_up(B, 8)                 # sublane-friendly rows
    vmem_limit = _vmem_limit_bytes()
    c128 = _round_up(C, 128)

    if tn is None:
        tn = _choose_tn(E, Bp, vmem_limit,
                        w_itemsize=jnp.dtype(weight_stream_dtype).itemsize)
        tn = min(tn, c128)
        n_tiles = -(-c128 // tn)
        max_tiles = c128 // 128
        if max_tiles >= 2:
            # Keep >= 2 tiles and an even tile count so the "parallel" grid
            # axis splits evenly across v7x's two TensorCores (no cost on the
            # single-TC v5e/v6e).
            n_tiles = max(n_tiles, 2)
            if n_tiles % 2 and n_tiles < max_tiles:
                n_tiles += 1
            tn = _round_up(-(-c128 // n_tiles), 128)
    assert tn % 128 == 0
    tn = min(tn, c128)
    Cp = _round_up(c128, tn)

    # ---- wrapper-side prep (amortize across steps in a real training loop) --
    # Hoisted feature normalization (the fea block is resident across every
    # grid step -> normalize once here, not per grid step in-kernel).
    fea32 = fea.astype(jnp.float32)
    fea_n = fea32 * jax.lax.rsqrt(
        jnp.maximum(jnp.sum(fea32 * fea32, axis=-1, keepdims=True),
                    _EPS * _EPS))
    fea_p = jnp.pad(fea_n, ((0, Bp - B), (0, 0)))
    # Weight: pad classes, transpose to (E, Cp) so the MXU reads it directly
    # as the (K, N) operand (no per-tile vxpose), stream it from HBM as bf16.
    w_p = jnp.pad(weight.astype(jnp.float32), ((0, Cp - C), (0, 0)))
    w_p = w_p.T.astype(weight_stream_dtype)                 # (E, Cp)
    lab_p = jnp.pad(label.astype(jnp.int32), (0, Bp - B),
                    constant_values=-1).reshape(Bp, 1)

    def kernel(fea_ref, w_ref, lab_ref, out_ref):
        j = pl.program_id(0)
        fea_nb = fea_ref[...]                                # (Bp, E) f32, unit rows
        w = w_ref[...].astype(jnp.float32)                   # (E, tn)
        # Per-class L2 norm: tn EUP rsqrts + E*tn multiplies (no VPU divides).
        inv_norm = jax.lax.rsqrt(
            jnp.maximum(jnp.sum(w * w, axis=0, keepdims=True), _EPS * _EPS))
        w_n = w * inv_norm                                   # (E, tn)
        if mxu_bf16:
            cos = jnp.dot(fea_nb.astype(jnp.bfloat16),
                          w_n.astype(jnp.bfloat16),
                          preferred_element_type=jnp.float32)
        else:
            cos = jnp.dot(fea_nb, w_n,
                          preferred_element_type=jnp.float32)  # (Bp, tn)
        sine = jnp.sqrt(jnp.clip(1.0 - cos * cos, 0.0, 1.0))
        phi = cos * cos_m - sine * sin_m
        if easy_margin:
            phi = jnp.where(cos > 0.0, phi, cos)
        else:
            phi = jnp.where(cos > th, phi, cos - mm)
        # one-hot select for this C tile
        cols = j * tn + jax.lax.broadcasted_iota(jnp.int32, cos.shape, 1)
        hit = cols == lab_ref[...]                           # (Bp, tn)
        out_ref[...] = (jnp.where(hit, phi, cos) * s).astype(out_ref.dtype)

    cost = pl.CostEstimate(
        flops=2 * Bp * E * Cp,
        transcendentals=Bp * Cp + Cp + Bp,                   # sqrt + rsqrt
        bytes_accessed=(fea_p.size * fea_p.dtype.itemsize
                        + w_p.size * w_p.dtype.itemsize
                        + lab_p.size * 4 + Bp * Cp * 4))

    out = pl.pallas_call(
        kernel,
        out_shape=jax.ShapeDtypeStruct((Bp, Cp), jnp.float32),
        grid_spec=pltpu.PrefetchScalarGridSpec(
            num_scalar_prefetch=0,
            grid=(Cp // tn,),
            in_specs=[
                pl.BlockSpec((Bp, E), lambda j: (0, 0)),     # resident features
                pl.BlockSpec((E, tn), lambda j: (0, j)),     # (K, N) weight tile
                pl.BlockSpec((Bp, 1), lambda j: (0, 0)),     # labels
            ],
            out_specs=pl.BlockSpec((Bp, tn), lambda j: (0, j)),
        ),
        compiler_params=pltpu.CompilerParams(
            dimension_semantics=("parallel",),
            vmem_limit_bytes=int(vmem_limit)),
        cost_estimate=cost,
    )(fea_p, w_p, lab_p)
    return out[:B, :C]


def arcface_reference(fea, weight, label, *, s, m, easy_margin):
    """Plain-JAX reference of Arcface.compute (f32)."""
    fea = fea.astype(jnp.float32)
    w = weight.astype(jnp.float32)
    fea_n = fea / jnp.maximum(
        jnp.sqrt(jnp.sum(fea * fea, axis=-1, keepdims=True)), _EPS)
    w_n = w / jnp.maximum(
        jnp.sqrt(jnp.sum(w * w, axis=-1, keepdims=True)), _EPS)
    cos = fea_n @ w_n.T
    sine = jnp.sqrt(jnp.clip(1.0 - cos * cos, 0.0, 1.0))
    phi = cos * math.cos(m) - sine * math.sin(m)
    if easy_margin:
        phi = jnp.where(cos > 0.0, phi, cos)
    else:
        th = math.cos(math.pi - m)
        mm = math.sin(math.pi - m) * m
        phi = jnp.where(cos > th, phi, cos - mm)
    one_hot = jax.nn.one_hot(label, weight.shape[0], dtype=jnp.float32)
    return (one_hot * phi + (1.0 - one_hot) * cos) * s


def fake_backbone(image, emb_size, key):
    # TODO(synk): the real backbone (`self.model`) is an external module passed
    # to __init__; emulated here with a fixed random projection + tanh (glue).
    B = image.shape[0]
    flat = image.reshape(B, -1).astype(jnp.float32)
    proj = jax.random.normal(key, (flat.shape[1], emb_size), jnp.float32)
    proj = proj / (flat.shape[1] ** 0.5)
    return jnp.tanh(flat @ proj).astype(jnp.bfloat16)


def arcface_embd_forward(label, image, weight, *, emb_size, s, m,
                         easy_margin, bb_key, **kw):
    embedd = fake_backbone(image, emb_size, bb_key)
    if label is None:
        return embedd
    logits = arcface_logits(embedd, weight, label, s=s, m=m,
                            easy_margin=easy_margin, **kw)
    return embedd, logits


if __name__ == "__main__":
    key = jax.random.PRNGKey(0)
    k_img, k_lab, k_w, k_bb = jax.random.split(key, 4)

    batch, channels, spatial = 2, 4, 16
    emb_size, num_class = 128, 1000
    margin_s, margin_m, easy_margin = 64.0, 0.5, False

    image = jax.random.normal(k_img, (batch, channels, spatial, spatial),
                              jnp.float32)
    label = jax.random.randint(k_lab, (batch,), 0, num_class, dtype=jnp.int32)

    # xavier_uniform_ on (num_class, emb_size)
    bound = math.sqrt(6.0 / (num_class + emb_size))
    weight = jax.random.uniform(k_w, (num_class, emb_size), jnp.float32,
                                -bound, bound)

    embedd, logits = arcface_embd_forward(
        label, image, weight, emb_size=emb_size, s=margin_s, m=margin_m,
        easy_margin=easy_margin, bb_key=k_bb)
    embedd = jax.block_until_ready(embedd)
    logits = jax.block_until_ready(logits)

    assert embedd.shape == (batch, emb_size)
    assert logits.shape == (batch, num_class) and logits.dtype == jnp.float32

    # label=None path returns the embedding only
    embedd_only = jax.block_until_ready(
        arcface_embd_forward(None, image, weight, emb_size=emb_size,
                             s=margin_s, m=margin_m, easy_margin=easy_margin,
                             bb_key=k_bb))
    assert embedd_only.shape == (batch, emb_size)

    # References: exact torch-f32 semantics, and the bf16-rounded weight that
    # the kernel actually streams from HBM.
    ref_f32 = arcface_reference(embedd, weight, label, s=margin_s, m=margin_m,
                                easy_margin=easy_margin)
    ref_b16 = arcface_reference(
        embedd, weight.astype(jnp.bfloat16).astype(jnp.float32), label,
        s=margin_s, m=margin_m, easy_margin=easy_margin)

    def cos_close(a, b, atol, rtol):
        # compare at cosine scale (divide out the s=64 amplification)
        return bool(jnp.allclose(a / margin_s, b / margin_s,
                                 atol=atol, rtol=rtol))

    assert cos_close(logits, ref_b16, 2e-3, 2e-3), \
        float(jnp.max(jnp.abs(logits - ref_b16))) / margin_s
    assert cos_close(logits, ref_f32, 5e-3, 5e-3), \
        float(jnp.max(jnp.abs(logits - ref_f32))) / margin_s

    # Exercise the multi-tile C grid explicitly (forced small class tile)
    logits_tiled = jax.block_until_ready(
        arcface_logits(embedd, weight, label, s=margin_s, m=margin_m,
                       easy_margin=easy_margin, tn=128))
    assert cos_close(logits_tiled, ref_b16, 2e-3, 2e-3), \
        float(jnp.max(jnp.abs(logits_tiled - ref_b16))) / margin_s

    # Exercise the bf16-MXU-operand path (compute-bound large-batch option)
    logits_b16mxu = jax.block_until_ready(
        arcface_logits(embedd, weight, label, s=margin_s, m=margin_m,
                       easy_margin=easy_margin, mxu_bf16=True))
    assert cos_close(logits_b16mxu, ref_f32, 8e-3, 8e-3), \
        float(jnp.max(jnp.abs(logits_b16mxu - ref_f32))) / margin_s

    print("KERNEL_OK")
</pallas_src>

<mosaic_0001>
module attributes {stable_mosaic.version = 11 : i64} {
  func.func @kernel(%arg0: i32, %arg1: memref<8x128xf32, #tpu.memory_space<vmem>>, %arg2: memref<128x512xbf16, #tpu.memory_space<vmem>>, %arg3: memref<8x1xi32, #tpu.memory_space<vmem>>, %arg4: memref<8x512xf32, #tpu.memory_space<vmem>>) attributes {dimension_semantics = [#tpu.dimension_semantics<parallel>], iteration_bounds = array<i64: 2>, scalar_prefetch = 0 : i64, scratch_operands = 0 : i64, tpu.core_type = #tpu.core_type<tc>, window_params = [{pipeline_mode = #tpu.pipeline_mode<synchronous>, transform_indices = @transform_0, window_bounds = array<i64: 8, 128>}, {transform_indices = @transform_1, window_bounds = array<i64: 128, 512>}, {pipeline_mode = #tpu.pipeline_mode<synchronous>, transform_indices = @transform_2, window_bounds = array<i64: 8, 1>}, {transform_indices = @transform_3, window_bounds = array<i64: 8, 512>}]} {
    %c0 = arith.constant 0 : index
    %c0_0 = arith.constant 0 : index
    %0 = vector.load %arg1[%c0, %c0_0] : memref<8x128xf32, #tpu.memory_space<vmem>>, vector<8x128xf32>
    %c0_1 = arith.constant 0 : index
    %c0_2 = arith.constant 0 : index
    %1 = vector.load %arg2[%c0_1, %c0_2] : memref<128x512xbf16, #tpu.memory_space<vmem>>, vector<128x512xbf16>
    %2 = arith.extf %1 : vector<128x512xbf16> to vector<128x512xf32>
    %3 = arith.mulf %2, %2 : vector<128x512xf32>
    %cst = arith.constant dense<0.000000e+00> : vector<512xf32>
    %4 = vector.multi_reduction <add>, %3, %cst [0] : vector<128x512xf32> to vector<512xf32>
    %5 = vector.shape_cast %4 : vector<512xf32> to vector<1x512xf32>
    %cst_3 = arith.constant 1.000000e-24 : f32
    %6 = vector.broadcast %cst_3 : f32 to vector<1x512xf32>
    %7 = arith.maximumf %5, %6 : vector<1x512xf32>
    %8 = math.rsqrt %7 : vector<1x512xf32>
    %9 = vector.broadcast %8 : vector<1x512xf32> to vector<128x512xf32>
    %10 = arith.mulf %2, %9 : vector<128x512xf32>
    %cst_4 = arith.constant dense<0.000000e+00> : vector<8x512xf32>
    %11 = tpu.matmul %0, %10, %cst_4 {dimension_numbers = #tpu.dot_dimension_numbers<[1], [0], [0], [1], [0, 0, 1, 1], [], []>} : vector<8x128xf32>, vector<128x512xf32>, vector<8x512xf32> -> vector<8x512xf32>
    %12 = arith.mulf %11, %11 : vector<8x512xf32>
    %cst_5 = arith.constant 1.000000e+00 : f32
    %13 = vector.broadcast %cst_5 : f32 to vector<8x512xf32>
    %14 = arith.subf %13, %12 : vector<8x512xf32>
    %cst_6 = arith.constant 0.000000e+00 : f32
    %cst_7 = arith.constant 1.000000e+00 : f32
    %15 = vector.broadcast %cst_6 : f32 to vector<8x512xf32>
    %16 = arith.maximumf %15, %14 : vector<8x512xf32>
    %17 = vector.broadcast %cst_7 : f32 to vector<8x512xf32>
    %18 = arith.minimumf %17, %16 : vector<8x512xf32>
    %19 = math.sqrt %18 : vector<8x512xf32>
    %cst_8 = arith.constant 0.87758255 : f32
    %20 = vector.broadcast %cst_8 : f32 to vector<8x512xf32>
    %21 = arith.mulf %11, %20 : vector<8x512xf32>
    %cst_9 = arith.constant 0.47942555 : f32
    %22 = vector.broadcast %cst_9 : f32 to vector<8x512xf32>
    %23 = arith.mulf %19, %22 : vector<8x512xf32>
    %24 = arith.subf %21, %23 : vector<8x512xf32>
    %cst_10 = arith.constant -0.87758255 : f32
    %25 = vector.broadcast %cst_10 : f32 to vector<8x512xf32>
    %26 = arith.cmpf ogt, %11, %25 : vector<8x512xf32>
    %cst_11 = arith.constant 0.239712775 : f32
    %27 = vector.broadcast %cst_11 : f32 to vector<8x512xf32>
    %28 = arith.subf %11, %27 : vector<8x512xf32>
    %29 = arith.select %26, %24, %28 : vector<8x512xi1>, vector<8x512xf32>
    %c512_i32 = arith.constant 512 : i32
    %30 = arith.muli %arg0, %c512_i32 : i32
    %31 = tpu.iota {dimensions = array<i32: 1>} : vector<8x512xi32>
    %32 = vector.broadcast %30 : i32 to vector<8x512xi32>
    %33 = arith.addi %32, %31 : vector<8x512xi32>
    %c0_12 = arith.constant 0 : index
    %c0_13 = arith.constant 0 : index
    %34 = vector.load %arg3[%c0_12, %c0_13] : memref<8x1xi32, #tpu.memory_space<vmem>>, vector<8x1xi32>
    %35 = vector.broadcast %34 : vector<8x1xi32> to vector<8x512xi32>
    %36 = arith.cmpi eq, %33, %35 : vector<8x512xi32>
    %37 = arith.select %36, %29, %11 : vector<8x512xi1>, vector<8x512xf32>
    %cst_14 = arith.constant 6.400000e+01 : f32
    %38 = vector.broadcast %cst_14 : f32 to vector<8x512xf32>
    %39 = arith.mulf %37, %38 : vector<8x512xf32>
    %c0_15 = arith.constant 0 : index
    %c0_16 = arith.constant 0 : index
    %40 = vector.load %arg4[%c0_15, %c0_16] : memref<8x512xf32, #tpu.memory_space<vmem>>, vector<8x512xf32>
    tpu.vector_store %arg4[%c0_15, %c0_16], %39 {strides = array<i32>} : memref<8x512xf32, #tpu.memory_space<vmem>>, vector<8x512xf32>,
    return
  }
  func.func @transform_0(%arg0: i32) -> (i32, i32) {
    %c0_i32 = arith.constant 0 : i32
    %c0_i32_0 = arith.constant 0 : i32
    %c0_i32_1 = arith.constant 0 : i32
    return %c0_i32, %c0_i32_0 : i32, i32
  }
  func.func @transform_1(%arg0: i32) -> (i32, i32) {
    %c0_i32 = arith.constant 0 : i32
    %c0_i32_0 = arith.constant 0 : i32
    return %c0_i32, %arg0 : i32, i32
  }
  func.func @transform_2(%arg0: i32) -> (i32, i32) {
    %c0_i32 = arith.constant 0 : i32
    %c0_i32_0 = arith.constant 0 : i32
    %c0_i32_1 = arith.constant 0 : i32
    return %c0_i32, %c0_i32_0 : i32, i32
  }
  func.func @transform_3(%arg0: i32) -> (i32, i32) {
    %c0_i32 = arith.constant 0 : i32
    %c0_i32_0 = arith.constant 0 : i32
    return %c0_i32, %arg0 : i32, i32
  }
}

</mosaic_0001>

<llo_original>
// kernel: tpu_custom_call.1
$region0: #{tpu_custom_call.1}
  #allocation0 [shape = 'u32[]', space=smem, size = 0x4, offset = 0x4, fixed_abs, tag = 'smem constant byte address 0x4 - core index']
  #allocation1 [shape = 'u32[144,128]{1,0:T(1,128)}', space=vmem, size = 0x12000, scoped, tag = 'internal scratch']
  %s0 = inlined_call_operand.vmem [shape: f32[8,128], index: 0, kind: input, shape index: {}]
  %s1 = inlined_call_operand.hbm [shape: bf16[128,1024], index: 1, kind: input, shape index: {}]
  %s2 = inlined_call_operand.vmem [shape: s32[8,1], index: 2, kind: input, shape index: {}]
  %s3 = inlined_call_operand.hbm [shape: f32[8,1024], index: 3, kind: output, shape index: {}]
  %s4 = sld [smem:[#allocation0]]
  $region49: #{tpu_custom_call.1} parent=0
    _
  %s6 = ssub.s32 1, %s4
  %s7 = scalar_select 0, %s6, %s4
  $region1: #{tpu_custom_call.1} parent=0
    #allocation2 [shape = 'u8[262144]{0}', space=vmem, size = 0x40000, scoped, tag = 'input window, operand 1']
    #allocation3 [shape = 's32[2]{0}', space=sflag, size = 0x8, scoped, tag = 'scoped memory for tpu_custom_call.1']
    #allocation4 [shape = 's32[2]{0}', space=sflag, size = 0x8, scoped, tag = 'scoped memory for tpu_custom_call.1']
    #allocation5 [shape = 'u8[32768]{0}', space=vmem, size = 0x8000, scoped, tag = 'output window, operand 0']
    %8 = vsyncpa [#allocation3], 0
    %s9 = scalar_lea.sflag [#allocation3], 1
    %10 = vsyncpa %s9, 0
    %11 = vsyncpa [#allocation4], 0
    %s12 = scalar_lea.sflag [#allocation4], 1
    %13 = vsyncpa %s12, 0
    loop: start=0, step=1, limit=4
    $region2: #{tpu_custom_call.1} parent=1 // loop_pre_header
      _
    $region3: #{tpu_custom_call.1} parent=1 // loop_header
      %s15 = sphi 0, %s19
      %p16 = scmp.ge.s32.totalorder %s15, 4
      %s23 = sphi 0, %s23
      %s25 = sphi 0, %s23
      %s26 = sphi 0, %s25
      %s40 = sphi 0, %s26
      %s46 = sphi 0, %s48
      %s49 = sphi 0, %s46
      %s50 = sphi 0, %s49
      %s66 = sphi 0, %s50
      %s70 = sphi 0, %s70
      %s72 = sphi 0, %s70
      %s73 = sphi 0, %s72
      %s87 = sphi 0, %s73
      %s93 = sphi 0, %s95
      %s96 = sphi 0, %s93
      %s97 = sphi 0, %s96
      %s113 = sphi 0, %s97
    $region4: #{tpu_custom_call.1} parent=1 // loop_header_branch
      %18 = sbr.rel (%p16) target = $region8
    $region5: #{tpu_custom_call.1} parent=1 // loop_body
      %s20 = ssub.s32 %s15, 1
      %s21 = ssub.s32 %s15, 2
      %s22 = sadd.s32 %s15, 1
      %s24 = sadd.s32 %s23, 1
      %p27 = scmp.eq.s32.totalorder %s15, 1
      %p28 = scmp.ne.s32.totalorder %s23, %s25
      %p29 = scmp.eq.s32.totalorder %s15, 0
      %p30 = por %p28, %p29
      %p31 = scmp.ne.s32.totalorder %s23, %s25
      %p32 = scmp.eq.s32.totalorder %s20, 1
      %p33 = por %p31, %p32
      %p34 = scmp.ne.s32.totalorder %s25, %s26
      %p35 = scmp.eq.s32.totalorder %s20, 0
      %p36 = por %p34, %p35
      %p37 = scmp.ne.s32.totalorder %s25, %s26
      %p38 = scmp.eq.s32.totalorder %s21, 1
      %p39 = por %p37, %p38
      %p41 = scmp.ne.s32.totalorder %s26, %s40
      %p42 = scmp.eq.s32.totalorder %s21, 0
      %p43 = por %p41, %p42
      %s44 = ssub.s32 %s15, %s22
      %p45 = scmp.eq.s32.totalorder %s44, 0
      %s47 = sadd.s32 %s46, 1
      %s48 = scalar_select %p45, %s46, %s47
      %p51 = pneg %p45
      %p52 = scmp.eq.s32.totalorder %s15, 1
      %p53 = por %p51, %p52
      %p54 = scmp.ne.s32.totalorder %s46, %s49
      %p55 = scmp.eq.s32.totalorder %s15, 0
      %p56 = por %p54, %p55
      %p57 = scmp.ne.s32.totalorder %s46, %s49
      %p58 = scmp.eq.s32.totalorder %s20, 1
      %p59 = por %p57, %p58
      %p60 = scmp.ne.s32.totalorder %s49, %s50
      %p61 = scmp.eq.s32.totalorder %s20, 0
      %p62 = por %p60, %p61
      %p63 = scmp.ne.s32.totalorder %s49, %s50
      %p64 = scmp.eq.s32.totalorder %s21, 1
      %p65 = por %p63, %p64
      %p67 = scmp.ne.s32.totalorder %s50, %s66
      %p68 = scmp.eq.s32.totalorder %s21, 0
      %p69 = por %p67, %p68
      %s71 = sadd.s32 %s70, 1
      %p74 = scmp.eq.s32.totalorder %s15, 1
      %p75 = scmp.ne.s32.totalorder %s70, %s72
      %p76 = scmp.eq.s32.totalorder %s15, 0
      %p77 = por %p75, %p76
      %p78 = scmp.ne.s32.totalorder %s70, %s72
      %p79 = scmp.eq.s32.totalorder %s20, 1
      %p80 = por %p78, %p79
      %p81 = scmp.ne.s32.totalorder %s72, %s73
      %p82 = scmp.eq.s32.totalorder %s20, 0
      %p83 = por %p81, %p82
      %p84 = scmp.ne.s32.totalorder %s72, %s73
      %p85 = scmp.eq.s32.totalorder %s21, 1
      %p86 = por %p84, %p85
      %p88 = scmp.ne.s32.totalorder %s73, %s87
      %p89 = scmp.eq.s32.totalorder %s21, 0
      %p90 = por %p88, %p89
      %s91 = ssub.s32 %s15, %s22
      %p92 = scmp.eq.s32.totalorder %s91, 0
      %s94 = sadd.s32 %s93, 1
      %s95 = scalar_select %p92, %s93, %s94
      %p98 = pneg %p92
      %p99 = scmp.eq.s32.totalorder %s15, 1
      %p100 = por %p98, %p99
      %p101 = scmp.ne.s32.totalorder %s93, %s96
      %p102 = scmp.eq.s32.totalorder %s15, 0
      %p103 = por %p101, %p102
      %p104 = scmp.ne.s32.totalorder %s93, %s96
      %p105 = scmp.eq.s32.totalorder %s20, 1
      %p106 = por %p104, %p105
      %p107 = scmp.ne.s32.totalorder %s96, %s97
      %p108 = scmp.eq.s32.totalorder %s20, 0
      %p109 = por %p107, %p108
      %p110 = scmp.ne.s32.totalorder %s96, %s97
      %p111 = scmp.eq.s32.totalorder %s21, 1
      %p112 = por %p110, %p111
      %p114 = scmp.ne.s32.totalorder %s97, %s113
      %p115 = scmp.eq.s32.totalorder %s21, 0
      %p116 = por %p114, %p115
      %p117 = scmp.le.s32.totalorder 1, %s15
      %p118 = scmp.lt.s32.totalorder %s15, 3
      %p119 = pnand %p117, %p118
      %p120 = pneg %p119
      // Predicated region
      $region9: #{tpu_custom_call.1} parent=5 // pred_check
        _
      $region10: #{tpu_custom_call.1} parent=5 // pred_check_branch
        %122 = sbr.rel (%p119) target = $region12
      $region11: #{tpu_custom_call.1} parent=5 // pred_region
        %s123 = ssub.s32 %s15, 1
        // Predicated region
        $region13: #{tpu_custom_call.1} parent=11 // pred_check
          %p124 = pneg %p36
        $region14: #{tpu_custom_call.1} parent=11 // pred_check_branch
          %126 = sbr.rel (%p124) target = $region16
        $region15: #{tpu_custom_call.1} parent=11 // pred_region
          _
        $region16: #{tpu_custom_call.1} parent=11 // pred_fallthru
          _
        // Predicated region
        $region17: #{tpu_custom_call.1} parent=11 // pred_check
          %p127 = pneg %p83
        $region18: #{tpu_custom_call.1} parent=11 // pred_check_branch
          %129 = sbr.rel (%p127) target = $region20
        $region19: #{tpu_custom_call.1} parent=11 // pred_region
          _
        $region20: #{tpu_custom_call.1} parent=11 // pred_fallthru
          _
      $region12: #{tpu_custom_call.1} parent=5 // pred_fallthru
        _
      %p130 = scmp.lt.s32.totalorder %s15, 2
      // Predicated region
      $region21: #{tpu_custom_call.1} parent=5 // pred_check
        %p131 = pneg %p130
      $region22: #{tpu_custom_call.1} parent=5 // pred_check_branch
        %133 = sbr.rel (%p131) target = $region24
      $region23: #{tpu_custom_call.1} parent=5 // pred_region
        // Predicated region
        $region25: #{tpu_custom_call.1} parent=23 // pred_check
          %p134 = pneg %p56
        $region26: #{tpu_custom_call.1} parent=23 // pred_check_branch
          %136 = sbr.rel (%p134) target = $region28
        $region27: #{tpu_custom_call.1} parent=23 // pred_region
          %s137 = sand.u32 %s46, 1
          %s138 = scalar_lea.sflag [#allocation3], %s137
          %s139 = sand.u32 %s46, 1
          %s140 = smul.addr %s139, 256
          %s141 = scalar_lea.vmem [#allocation2], %s140
          %s142 = smul.u32 4, %s15
          %s144 = ssub.s32 4096, 4096
          %145 = vsyncadd %s138, %s144
          %s146 = smul.addr %s142, 64
          %s147 = scalar_lea.hbm %s1, %s146
          %s148 = sshll.u32 %s141, 4
          %s149 = int_to_ptr.vmem [resolvable:$true] %s148
          %154 = dma.hbm_to_vmem [thread:$0]  %s147, 4096, %s149, %s138, 512, 256, 16
        $region28: #{tpu_custom_call.1} parent=23 // pred_fallthru
          _
      $region24: #{tpu_custom_call.1} parent=5 // pred_fallthru
        _
      %p155 = scmp.le.s32.totalorder 1, %s15
      %p156 = scmp.lt.s32.totalorder %s15, 3
      %p157 = pnand %p155, %p156
      %p158 = pneg %p157
      // Predicated region
      $region29: #{tpu_custom_call.1} parent=5 // pred_check
        _
      $region30: #{tpu_custom_call.1} parent=5 // pred_check_branch
        %160 = sbr.rel (%p157) target = $region32
      $region31: #{tpu_custom_call.1} parent=5 // pred_region
        %s161 = ssub.s32 %s15, 1
        %s162 = sand.u32 %s49, 1
        %s163 = scalar_lea.sflag [#allocation3], %s162
        %s164 = sand.u32 %s49, 1
        %s165 = smul.addr %s164, 256
        %s166 = scalar_lea.vmem [#allocation2], %s165
        // Predicated region
        $region33: #{tpu_custom_call.1} parent=31 // pred_check
          %p167 = pneg %p62
        $region34: #{tpu_custom_call.1} parent=31 // pred_check_branch
          %169 = sbr.rel (%p167) target = $region36
        $region35: #{tpu_custom_call.1} parent=31 // pred_region
          %170 = dma.done %s163, 4096
        $region36: #{tpu_custom_call.1} parent=31 // pred_fallthru
          _
        %p171 = pneg %p36
        %p172 = pneg %p33
        %s173 = sand.u32 %s49, 1
        %s174 = scalar_lea.sflag [#allocation3], %s173
        %s175 = sand.u32 %s49, 1
        %s176 = smul.addr %s175, 256
        %s177 = scalar_lea.vmem [#allocation2], %s176
        %p178 = pneg %p62
        %p179 = pneg %p59
        %p180 = pneg %p83
        %p181 = pneg %p80
        %p182 = pneg %p109
        %p183 = pneg %p106
        %s184 = sand.u32 %s96, 1
        %s185 = scalar_lea.sflag [#allocation4], %s184
        %s186 = sand.u32 %s96, 1
        %s187 = smul.addr %s186, 32
        %s188 = scalar_lea.vmem [#allocation5], %s187
        %s189 = smul.u32 4, %s20
        %s190 = smul.u32 4, %s20
        %v191 = vld [vmem:[%s0] sm:$0xff]
        %v192 = vld [vmem:[%s166] sm:$0xff]
        %v193 = vld [vmem:[%s166 + $0x8] sm:$0xff]
        %v194 = vld [vmem:[%s166 + $0x10] sm:$0xff]
        %v195 = vld [vmem:[%s166 + $0x18] sm:$0xff]
        %v196 = vld [vmem:[%s166 + $0x20] sm:$0xff]
        %v197 = vld [vmem:[%s166 + $0x28] sm:$0xff]
        %v198 = vld [vmem:[%s166 + $0x30] sm:$0xff]
        %v199 = vld [vmem:[%s166 + $0x38] sm:$0xff]
        %v200 = vld [vmem:[%s166 + $0x40] sm:$0xff]
        %v201 = vld [vmem:[%s166 + $0x48] sm:$0xff]
        %v202 = vld [vmem:[%s166 + $0x50] sm:$0xff]
        %v203 = vld [vmem:[%s166 + $0x58] sm:$0xff]
        %v204 = vld [vmem:[%s166 + $0x60] sm:$0xff]
        %v205 = vld [vmem:[%s166 + $0x68] sm:$0xff]
        %v206 = vld [vmem:[%s166 + $0x70] sm:$0xff]
        %v207 = vld [vmem:[%s166 + $0x78] sm:$0xff]
        %v208 = vld [vmem:[%s166 + $0x80] sm:$0xff]
        %v209 = vld [vmem:[%s166 + $0x88] sm:$0xff]
        %v210 = vld [vmem:[%s166 + $0x90] sm:$0xff]
        %v211 = vld [vmem:[%s166 + $0x98] sm:$0xff]
        %v212 = vld [vmem:[%s166 + $0xa0] sm:$0xff]
        %v213 = vld [vmem:[%s166 + $0xa8] sm:$0xff]
        %v214 = vld [vmem:[%s166 + $0xb0] sm:$0xff]
        %v215 = vld [vmem:[%s166 + $0xb8] sm:$0xff]
        %v216 = vld [vmem:[%s166 + $0xc0] sm:$0xff]
        %v217 = vld [vmem:[%s166 + $0xc8] sm:$0xff]
        %v218 = vld [vmem:[%s166 + $0xd0] sm:$0xff]
        %v219 = vld [vmem:[%s166 + $0xd8] sm:$0xff]
        %v220 = vld [vmem:[%s166 + $0xe0] sm:$0xff]
        %v221 = vld [vmem:[%s166 + $0xe8] sm:$0xff]
        %v222 = vld [vmem:[%s166 + $0xf0] sm:$0xff]
        %v223 = vld [vmem:[%s166 + $0xf8] sm:$0xff]
        %v224 = vunpack.c.l.bf16 %v192
        %v225 = vunpack.c.h.bf16 %v192
        %v226 = vunpack.c.l.bf16 %v193
        %v227 = vunpack.c.h.bf16 %v193
        %v228 = vunpack.c.l.bf16 %v194
        %v229 = vunpack.c.h.bf16 %v194
        %v230 = vunpack.c.l.bf16 %v195
        %v231 = vunpack.c.h.bf16 %v195
        %v232 = vunpack.c.l.bf16 %v196
        %v233 = vunpack.c.h.bf16 %v196
        %v234 = vunpack.c.l.bf16 %v197
        %v235 = vunpack.c.h.bf16 %v197
        %v236 = vunpack.c.l.bf16 %v198
        %v237 = vunpack.c.h.bf16 %v198
        %v238 = vunpack.c.l.bf16 %v199
        %v239 = vunpack.c.h.bf16 %v199
        %v240 = vunpack.c.l.bf16 %v200
        %v241 = vunpack.c.h.bf16 %v200
        %v242 = vunpack.c.l.bf16 %v201
        %v243 = vunpack.c.h.bf16 %v201
        %v244 = vunpack.c.l.bf16 %v202
        %v245 = vunpack.c.h.bf16 %v202
        %v246 = vunpack.c.l.bf16 %v203
        %v247 = vunpack.c.h.bf16 %v203
        %v248 = vunpack.c.l.bf16 %v204
        %v249 = vunpack.c.h.bf16 %v204
        %v250 = vunpack.c.l.bf16 %v205
        %v251 = vunpack.c.h.bf16 %v205
        %v252 = vunpack.c.l.bf16 %v206
        %v253 = vunpack.c.h.bf16 %v206
        %v254 = vunpack.c.l.bf16 %v207
        %v255 = vunpack.c.h.bf16 %v207
        %v256 = vunpack.c.l.bf16 %v208
        %v257 = vunpack.c.h.bf16 %v208
        %v258 = vunpack.c.l.bf16 %v209
        %v259 = vunpack.c.h.bf16 %v209
        %v260 = vunpack.c.l.bf16 %v210
        %v261 = vunpack.c.h.bf16 %v210
        %v262 = vunpack.c.l.bf16 %v211
        %v263 = vunpack.c.h.bf16 %v211
        %v264 = vunpack.c.l.bf16 %v212
        %v265 = vunpack.c.h.bf16 %v212
        %v266 = vunpack.c.l.bf16 %v213
        %v267 = vunpack.c.h.bf16 %v213
        %v268 = vunpack.c.l.bf16 %v214
        %v269 = vunpack.c.h.bf16 %v214
        %v270 = vunpack.c.l.bf16 %v215
        %v271 = vunpack.c.h.bf16 %v215
        %v272 = vunpack.c.l.bf16 %v216
        %v273 = vunpack.c.h.bf16 %v216
        %v274 = vunpack.c.l.bf16 %v217
        %v275 = vunpack.c.h.bf16 %v217
        %v276 = vunpack.c.l.bf16 %v218
        %v277 = vunpack.c.h.bf16 %v218
        %v278 = vunpack.c.l.bf16 %v219
        %v279 = vunpack.c.h.bf16 %v219
        %v280 = vunpack.c.l.bf16 %v220
        %v281 = vunpack.c.h.bf16 %v220
        %v282 = vunpack.c.l.bf16 %v221
        %v283 = vunpack.c.h.bf16 %v221
        %v284 = vunpack.c.l.bf16 %v222
        %v285 = vunpack.c.h.bf16 %v222
        %v286 = vunpack.c.l.bf16 %v223
        %v287 = vunpack.c.h.bf16 %v223
        %v288 = vmul.f32 %v224, %v224
        %v289 = vmul.f32 %v225, %v225
        %v290 = vmul.f32 %v226, %v226
        %v291 = vmul.f32 %v227, %v227
        %v292 = vmul.f32 %v228, %v228
        %v293 = vmul.f32 %v229, %v229
        %v294 = vmul.f32 %v230, %v230
        %v295 = vmul.f32 %v231, %v231
        %v296 = vmul.f32 %v232, %v232
        %v297 = vmul.f32 %v233, %v233
        %v298 = vmul.f32 %v234, %v234
        %v299 = vmul.f32 %v235, %v235
        %v300 = vmul.f32 %v236, %v236
        %v301 = vmul.f32 %v237, %v237
        %v302 = vmul.f32 %v238, %v238
        %v303 = vmul.f32 %v239, %v239
        %v304 = vmul.f32 %v240, %v240
        %v305 = vmul.f32 %v241, %v241
        %v306 = vmul.f32 %v242, %v242
        %v307 = vmul.f32 %v243, %v243
        %v308 = vmul.f32 %v244, %v244
        %v309 = vmul.f32 %v245, %v245
        %v310 = vmul.f32 %v246, %v246
        %v311 = vmul.f32 %v247, %v247
        %v312 = vmul.f32 %v248, %v248
        %v313 = vmul.f32 %v249, %v249
        %v314 = vmul.f32 %v250, %v250
        %v315 = vmul.f32 %v251, %v251
        %v316 = vmul.f32 %v252, %v252
        %v317 = vmul.f32 %v253, %v253
        %v318 = vmul.f32 %v254, %v254
        %v319 = vmul.f32 %v255, %v255
        %v320 = vmul.f32 %v256, %v256
        %v321 = vmul.f32 %v257, %v257
        %v322 = vmul.f32 %v258, %v258
        %v323 = vmul.f32 %v259, %v259
        %v324 = vmul.f32 %v260, %v260
        %v325 = vmul.f32 %v261, %v261
        %v326 = vmul.f32 %v262, %v262
        %v327 = vmul.f32 %v263, %v263
        %v328 = vmul.f32 %v264, %v264
        %v329 = vmul.f32 %v265, %v265
        %v330 = vmul.f32 %v266, %v266
        %v331 = vmul.f32 %v267, %v267
        %v332 = vmul.f32 %v268, %v268
        %v333 = vmul.f32 %v269, %v269
        %v334 = vmul.f32 %v270, %v270
        %v335 = vmul.f32 %v271, %v271
        %v336 = vmul.f32 %v272, %v272
        %v337 = vmul.f32 %v273, %v273
        %v338 = vmul.f32 %v274, %v274
        %v339 = vmul.f32 %v275, %v275
        %v340 = vmul.f32 %v276, %v276
        %v341 = vmul.f32 %v277, %v277
        %v342 = vmul.f32 %v278, %v278
        %v343 = vmul.f32 %v279, %v279
        %v344 = vmul.f32 %v280, %v280
        %v345 = vmul.f32 %v281, %v281
        %v346 = vmul.f32 %v282, %v282
        %v347 = vmul.f32 %v283, %v283
        %v348 = vmul.f32 %v284, %v284
        %v349 = vmul.f32 %v285, %v285
        %v350 = vmul.f32 %v286, %v286
        %v351 = vmul.f32 %v287, %v287
        %v352 = vadd.f32 %v288, %v292
        %v353 = vadd.f32 %v352, %v296
        %v354 = vadd.f32 %v353, %v300
        %v355 = vadd.f32 %v354, %v304
        %v356 = vadd.f32 %v355, %v308
        %v357 = vadd.f32 %v356, %v312
        %v358 = vadd.f32 %v357, %v316
        %v359 = vadd.f32 %v358, %v320
        %v360 = vadd.f32 %v359, %v324
        %v361 = vadd.f32 %v360, %v328
        %v362 = vadd.f32 %v361, %v332
        %v363 = vadd.f32 %v362, %v336
        %v364 = vadd.f32 %v363, %v340
        %v365 = vadd.f32 %v364, %v344
        %v366 = vadd.f32 %v365, %v348
        %v367 = vrot.slane %v366, 4
        %v368 = vadd.f32 %v366, %v367
        %v369 = vrot.slane %v368, 2
        %v370 = vadd.f32 %v368, %v369
        %v371 = vrot.slane %v370, 1
        %v372 = vadd.f32 %v370, %v371
        %v373 = vadd.f32 %v289, %v293
        %v374 = vadd.f32 %v373, %v297
        %v375 = vadd.f32 %v374, %v301
        %v376 = vadd.f32 %v375, %v305
        %v377 = vadd.f32 %v376, %v309
        %v378 = vadd.f32 %v377, %v313
        %v379 = vadd.f32 %v378, %v317
        %v380 = vadd.f32 %v379, %v321
        %v381 = vadd.f32 %v380, %v325
        %v382 = vadd.f32 %v381, %v329
        %v383 = vadd.f32 %v382, %v333
        %v384 = vadd.f32 %v383, %v337
        %v385 = vadd.f32 %v384, %v341
        %v386 = vadd.f32 %v385, %v345
        %v387 = vadd.f32 %v386, %v349
        %v388 = vrot.slane %v387, 4
        %v389 = vadd.f32 %v387, %v388
        %v390 = vrot.slane %v389, 2
        %v391 = vadd.f32 %v389, %v390
        %v392 = vrot.slane %v391, 1
        %v393 = vadd.f32 %v391, %v392
        %v394 = vadd.f32 %v290, %v294
        %v395 = vadd.f32 %v394, %v298
        %v396 = vadd.f32 %v395, %v302
        %v397 = vadd.f32 %v396, %v306
        %v398 = vadd.f32 %v397, %v310
        %v399 = vadd.f32 %v398, %v314
        %v400 = vadd.f32 %v399, %v318
        %v401 = vadd.f32 %v400, %v322
        %v402 = vadd.f32 %v401, %v326
        %v403 = vadd.f32 %v402, %v330
        %v404 = vadd.f32 %v403, %v334
        %v405 = vadd.f32 %v404, %v338
        %v406 = vadd.f32 %v405, %v342
        %v407 = vadd.f32 %v406, %v346
        %v408 = vadd.f32 %v407, %v350
        %v409 = vrot.slane %v408, 4
        %v410 = vadd.f32 %v408, %v409
        %v411 = vrot.slane %v410, 2
        %v412 = vadd.f32 %v410, %v411
        %v413 = vrot.slane %v412, 1
        %v414 = vadd.f32 %v412, %v413
        %v415 = vadd.f32 %v291, %v295
        %v416 = vadd.f32 %v415, %v299
        %v417 = vadd.f32 %v416, %v303
        %v418 = vadd.f32 %v417, %v307
        %v419 = vadd.f32 %v418, %v311
        %v420 = vadd.f32 %v419, %v315
        %v421 = vadd.f32 %v420, %v319
        %v422 = vadd.f32 %v421, %v323
        %v423 = vadd.f32 %v422, %v327
        %v424 = vadd.f32 %v423, %v331
        %v425 = vadd.f32 %v424, %v335
        %v426 = vadd.f32 %v425, %v339
        %v427 = vadd.f32 %v426, %v343
        %v428 = vadd.f32 %v427, %v347
        %v429 = vadd.f32 %v428, %v351
        %v430 = vrot.slane %v429, 4
        %v431 = vadd.f32 %v429, %v430
        %v432 = vrot.slane %v431, 2
        %v433 = vadd.f32 %v431, %v432
        %v434 = vrot.slane %v433, 1
        %v435 = vadd.f32 %v433, %v434
        %v436 = vmax.f32 %v372, 1e-24
        %v437 = vmax.f32 %v393, 1e-24
        %v438 = vmax.f32 %v414, 1e-24
        %v439 = vmax.f32 %v435, 1e-24
        %v440 = vrsqrt.pop %v436
        %v441 = vrsqrt.pop %v437
        %v442 = vrsqrt.pop %v438
        %v443 = vrsqrt.pop %v439
        %v444 = vmul.f32 %v224, %v440
        %v445 = vmul.f32 %v225, %v441
        %v446 = vmul.f32 %v226, %v442
        %v447 = vmul.f32 %v227, %v443
        %v448 = vmul.f32 %v228, %v440
        %v449 = vmul.f32 %v229, %v441
        %v450 = vmul.f32 %v230, %v442
        %v451 = vmul.f32 %v231, %v443
        %v452 = vmul.f32 %v232, %v440
        %v453 = vmul.f32 %v233, %v441
        %v454 = vmul.f32 %v234, %v442
        %v455 = vmul.f32 %v235, %v443
        %v456 = vmul.f32 %v236, %v440
        %v457 = vmul.f32 %v237, %v441
        %v458 = vmul.f32 %v238, %v442
        %v459 = vmul.f32 %v239, %v443
        %v460 = vmul.f32 %v240, %v440
        %v461 = vmul.f32 %v241, %v441
        %v462 = vmul.f32 %v242, %v442
        %v463 = vmul.f32 %v243, %v443
        %v464 = vmul.f32 %v244, %v440
        %v465 = vmul.f32 %v245, %v441
        %v466 = vmul.f32 %v246, %v442
        %v467 = vmul.f32 %v247, %v443
        %v468 = vmul.f32 %v248, %v440
        %v469 = vmul.f32 %v249, %v441
        %v470 = vmul.f32 %v250, %v442
        %v471 = vmul.f32 %v251, %v443
        %v472 = vmul.f32 %v252, %v440
        %v473 = vmul.f32 %v253, %v441
        %v474 = vmul.f32 %v254, %v442
        %v475 = vmul.f32 %v255, %v443
        %v476 = vmul.f32 %v256, %v440
        %v477 = vmul.f32 %v257, %v441
        %v478 = vmul.f32 %v258, %v442
        %v479 = vmul.f32 %v259, %v443
        %v480 = vmul.f32 %v260, %v440
        %v481 = vmul.f32 %v261, %v441
        %v482 = vmul.f32 %v262, %v442
        %v483 = vmul.f32 %v263, %v443
        %v484 = vmul.f32 %v264, %v440
        %v485 = vmul.f32 %v265, %v441
        %v486 = vmul.f32 %v266, %v442
        %v487 = vmul.f32 %v267, %v443
        %v488 = vmul.f32 %v268, %v440
        %v489 = vmul.f32 %v269, %v441
        %v490 = vmul.f32 %v270, %v442
        %v491 = vmul.f32 %v271, %v443
        %v492 = vmul.f32 %v272, %v440
        %v493 = vmul.f32 %v273, %v441
        %v494 = vmul.f32 %v274, %v442
        %v495 = vmul.f32 %v275, %v443
        %v496 = vmul.f32 %v276, %v440
        %v497 = vmul.f32 %v277, %v441
        %v498 = vmul.f32 %v278, %v442
        %v499 = vmul.f32 %v279, %v443
        %v500 = vmul.f32 %v280, %v440
        %v501 = vmul.f32 %v281, %v441
        %v502 = vmul.f32 %v282, %v442
        %v503 = vmul.f32 %v283, %v443
        %v504 = vmul.f32 %v284, %v440
        %v505 = vmul.f32 %v285, %v441
        %v506 = vmul.f32 %v286, %v442
        %v507 = vmul.f32 %v287, %v443
        %508 = vmatprep.subr.mxu0 %v505
        %509 = vmatpush1.msra.mxu0 %v504
        %510 = vmatprep.subr.mxu0 %v501
        %511 = vmatpush1.msra.mxu0 %v500
        %512 = vmatprep.subr.mxu0 %v497
        %513 = vmatpush1.msra.mxu0 %v496
        %514 = vmatprep.subr.mxu0 %v493
        %515 = vmatpush1.msra.mxu0 %v492
        %516 = vmatprep.subr.mxu0 %v489
        %517 = vmatpush1.msra.mxu0 %v488
        %518 = vmatprep.subr.mxu0 %v485
        %519 = vmatpush1.msra.mxu0 %v484
        %520 = vmatprep.subr.mxu0 %v481
        %521 = vmatpush1.msra.mxu0 %v480
        %522 = vmatprep.subr.mxu0 %v477
        %523 = vmatpush1.msra.mxu0 %v476
        %524 = vmatprep.subr.mxu0 %v473
        %525 = vmatpush1.msra.mxu0 %v472
        %526 = vmatprep.subr.mxu0 %v469
        %527 = vmatpush1.msra.mxu0 %v468
        %528 = vmatprep.subr.mxu0 %v465
        %529 = vmatpush1.msra.mxu0 %v464
        %530 = vmatprep.subr.mxu0 %v461
        %531 = vmatpush1.msra.mxu0 %v460
        %532 = vmatprep.subr.mxu0 %v457
        %533 = vmatpush1.msra.mxu0 %v456
        %534 = vmatprep.subr.mxu0 %v453
        %535 = vmatpush1.msra.mxu0 %v452
        %536 = vmatprep.subr.mxu0 %v449
        %537 = vmatpush1.msra.mxu0 %v448
        %538 = vmatprep.subr.mxu0 %v445
        %539 = vmatpush1.msra.mxu0 %v444
        %540 = vmatprep.subr.mxu0 0.0
        %541 = vmatpush2.msra.mxu0 0.0
        %542 = vmatprep.subr.mxu0 0.0
        %543 = vmatpush2.msra.mxu0 0.0
        %544 = vmatprep.subr.mxu0 0.0
        %545 = vmatpush2.msra.mxu0 0.0
        %546 = vmatprep.subr.mxu0 0.0
        %547 = vmatpush2.msra.mxu0 0.0
        %548 = vmatprep.subr.mxu0 0.0
        %549 = vmatpush2.msra.mxu0 0.0
        %550 = vmatprep.subr.mxu0 0.0
        %551 = vmatpush2.msra.mxu0 0.0
        %552 = vmatprep.subr.mxu0 0.0
        %553 = vmatpush2.msra.mxu0 0.0
        %554 = vmatprep.subr.mxu0 0.0
        %555 = vmatpush2.msra.mxu0 0.0
        %556 = vmatprep.subr.mxu0 0.0
        %557 = vmatpush2.msra.mxu0 0.0
        %558 = vmatprep.subr.mxu0 0.0
        %559 = vmatpush2.msra.mxu0 0.0
        %560 = vmatprep.subr.mxu0 0.0
        %561 = vmatpush2.msra.mxu0 0.0
        %562 = vmatprep.subr.mxu0 0.0
        %563 = vmatpush2.msra.mxu0 0.0
        %564 = vmatprep.subr.mxu0 0.0
        %565 = vmatpush2.msra.mxu0 0.0
        %566 = vmatprep.subr.mxu0 0.0
        %567 = vmatpush2.msra.mxu0 0.0
        %568 = vmatprep.subr.mxu0 0.0
        %569 = vmatpush2.msra.mxu0 0.0
        %570 = vmatprep.subr.mxu0 0.0
        %571 = vmatpush2.msra.mxu0 0.0
        %572 = vmatprep.mubr.f32.mxu0 0.0
        %573 = vmatmul.mubr.f32.gmra.mxu0 %v191
        %v574 = vpop.f32.mrf.mxu0
        %v575 = vadd.f32 0.0, %v574
        %v576 = vpop.f32.mrf.mxu0
        %v577 = vadd.f32 0.0, %v576
        %578 = vdwg.mxu0
        %579 = vmatprep.subr.mxu0 %v507
        %580 = vmatpush1.msra.mxu0 %v506
        %581 = vmatprep.subr.mxu0 %v503
        %582 = vmatpush1.msra.mxu0 %v502
        %583 = vmatprep.subr.mxu0 %v499
        %584 = vmatpush1.msra.mxu0 %v498
        %585 = vmatprep.subr.mxu0 %v495
        %586 = vmatpush1.msra.mxu0 %v494
        %587 = vmatprep.subr.mxu0 %v491
        %588 = vmatpush1.msra.mxu0 %v490
        %589 = vmatprep.subr.mxu0 %v487
        %590 = vmatpush1.msra.mxu0 %v486
        %591 = vmatprep.subr.mxu0 %v483
        %592 = vmatpush1.msra.mxu0 %v482
        %593 = vmatprep.subr.mxu0 %v479
        %594 = vmatpush1.msra.mxu0 %v478
        %595 = vmatprep.subr.mxu0 %v475
        %596 = vmatpush1.msra.mxu0 %v474
        %597 = vmatprep.subr.mxu0 %v471
        %598 = vmatpush1.msra.mxu0 %v470
        %599 = vmatprep.subr.mxu0 %v467
        %600 = vmatpush1.msra.mxu0 %v466
        %601 = vmatprep.subr.mxu0 %v463
        %602 = vmatpush1.msra.mxu0 %v462
        %603 = vmatprep.subr.mxu0 %v459
        %604 = vmatpush1.msra.mxu0 %v458
        %605 = vmatprep.subr.mxu0 %v455
        %606 = vmatpush1.msra.mxu0 %v454
        %607 = vmatprep.subr.mxu0 %v451
        %608 = vmatpush1.msra.mxu0 %v450
        %609 = vmatprep.subr.mxu0 %v447
        %610 = vmatpush1.msra.mxu0 %v446
        %611 = vmatprep.subr.mxu0 0.0
        %612 = vmatpush2.msra.mxu0 0.0
        %613 = vmatprep.subr.mxu0 0.0
        %614 = vmatpush2.msra.mxu0 0.0
        %615 = vmatprep.subr.mxu0 0.0
        %616 = vmatpush2.msra.mxu0 0.0
        %617 = vmatprep.subr.mxu0 0.0
        %618 = vmatpush2.msra.mxu0 0.0
        %619 = vmatprep.subr.mxu0 0.0
        %620 = vmatpush2.msra.mxu0 0.0
        %621 = vmatprep.subr.mxu0 0.0
        %622 = vmatpush2.msra.mxu0 0.0
        %623 = vmatprep.subr.mxu0 0.0
        %624 = vmatpush2.msra.mxu0 0.0
        %625 = vmatprep.subr.mxu0 0.0
        %626 = vmatpush2.msra.mxu0 0.0
        %627 = vmatprep.subr.mxu0 0.0
        %628 = vmatpush2.msra.mxu0 0.0
        %629 = vmatprep.subr.mxu0 0.0
        %630 = vmatpush2.msra.mxu0 0.0
        %631 = vmatprep.subr.mxu0 0.0
        %632 = vmatpush2.msra.mxu0 0.0
        %633 = vmatprep.subr.mxu0 0.0
        %634 = vmatpush2.msra.mxu0 0.0
        %635 = vmatprep.subr.mxu0 0.0
        %636 = vmatpush2.msra.mxu0 0.0
        %637 = vmatprep.subr.mxu0 0.0
        %638 = vmatpush2.msra.mxu0 0.0
        %639 = vmatprep.subr.mxu0 0.0
        %640 = vmatpush2.msra.mxu0 0.0
        %641 = vmatprep.subr.mxu0 0.0
        %642 = vmatpush2.msra.mxu0 0.0
        %643 = vmatprep.mubr.f32.mxu0 0.0
        %644 = vmatmul.mubr.f32.gmra.mxu0 %v191
        %v645 = vpop.f32.mrf.mxu0
        %v646 = vadd.f32 0.0, %v645
        %v647 = vpop.f32.mrf.mxu0
        %v648 = vadd.f32 0.0, %v647
        %649 = vdwg.mxu0
        %v650 = vmul.f32 %v575, %v575
        %v651 = vmul.f32 %v577, %v577
        %v652 = vmul.f32 %v646, %v646
        %v653 = vmul.f32 %v648, %v648
        %v654 = vsub.f32 1.0, %v650
        %v655 = vsub.f32 1.0, %v651
        %v656 = vsub.f32 1.0, %v652
        %v657 = vsub.f32 1.0, %v653
        %v658 = vmax.f32 %v654, 0.0
        %v659 = vmax.f32 %v655, 0.0
        %v660 = vmax.f32 %v656, 0.0
        %v661 = vmax.f32 %v657, 0.0
        %v662 = vmin.f32 %v658, 1.0
        %v663 = vmin.f32 %v659, 1.0
        %v664 = vmin.f32 %v660, 1.0
        %v665 = vmin.f32 %v661, 1.0
        %v666 = vrsqrt.pop %v662
        %v667 = vmul.f32 %v662, %v666
        %vm668 = vcmp.eq.f32.partialorder %v662, inf
        %v669 = vsel %vm668, %v662, %v667
        %vm670 = vcmp.eq.f32.partialorder %v662, 0.0
        %v671 = vand.u32 %v662, 2147483648
        %v672 = vsel %vm670, %v671, %v669
        %v673 = vrsqrt.pop %v663
        %v674 = vmul.f32 %v663, %v673
        %vm675 = vcmp.eq.f32.partialorder %v663, inf
        %v676 = vsel %vm675, %v663, %v674
        %vm677 = vcmp.eq.f32.partialorder %v663, 0.0
        %v678 = vand.u32 %v663, 2147483648
        %v679 = vsel %vm677, %v678, %v676
        %v680 = vrsqrt.pop %v664
        %v681 = vmul.f32 %v664, %v680
        %vm682 = vcmp.eq.f32.partialorder %v664, inf
        %v683 = vsel %vm682, %v664, %v681
        %vm684 = vcmp.eq.f32.partialorder %v664, 0.0
        %v685 = vand.u32 %v664, 2147483648
        %v686 = vsel %vm684, %v685, %v683
        %v687 = vrsqrt.pop %v665
        %v688 = vmul.f32 %v665, %v687
        %vm689 = vcmp.eq.f32.partialorder %v665, inf
        %v690 = vsel %vm689, %v665, %v688
        %vm691 = vcmp.eq.f32.partialorder %v665, 0.0
        %v692 = vand.u32 %v665, 2147483648
        %v693 = vsel %vm691, %v692, %v690
        %v694 = vmul.f32 %v575, 0.87758255
        %v695 = vmul.f32 %v577, 0.87758255
        %v696 = vmul.f32 %v646, 0.87758255
        %v697 = vmul.f32 %v648, 0.87758255
        %v698 = vmul.f32 %v672, 0.47942555
        %v699 = vmul.f32 %v679, 0.47942555
        %v700 = vmul.f32 %v686, 0.47942555
        %v701 = vmul.f32 %v693, 0.47942555
        %v702 = vsub.f32 %v694, %v698
        %v703 = vsub.f32 %v695, %v699
        %v704 = vsub.f32 %v696, %v700
        %v705 = vsub.f32 %v697, %v701
        %vm706 = vcmp.gt.f32.partialorder %v575, -0.87758255
        %vm707 = vcmp.gt.f32.partialorder %v577, -0.87758255
        %vm708 = vcmp.gt.f32.partialorder %v646, -0.87758255
        %vm709 = vcmp.gt.f32.partialorder %v648, -0.87758255
        %v710 = vsub.f32 %v575, 0.23971277
        %v711 = vsub.f32 %v577, 0.23971277
        %v712 = vsub.f32 %v646, 0.23971277
        %v713 = vsub.f32 %v648, 0.23971277
        %v714 = vsel %vm706, %v702, %v710
        %v715 = vsel %vm707, %v703, %v711
        %v716 = vsel %vm708, %v704, %v712
        %v717 = vsel %vm709, %v705, %v713
        %s718 = smul.u32 %s20, 512
        %v719 = vlaneseq
        %v720 = vand.u32 %v719, 127
        %v721 = vadd.s32 %v720, 128
        %v722 = vadd.s32 %v720, 256
        %v723 = vadd.s32 %v720, 384
        %v724 = vstv %s718
        %v725 = vadd.s32 %v724, %v720
        %v726 = vadd.s32 %v724, %v721
        %v727 = vadd.s32 %v724, %v722
        %v728 = vadd.s32 %v724, %v723
        %v729 = vld [vmem:[%s2] sm:$0xff]
        %730 = vset.pattern.permute.xlu0 0
        %731 = vperm.xlu0 %730, %v729
        %v732 = vpop.permute.xlu0 %731
        %vm733 = vcmp.eq.s32.totalorder %v725, %v732
        %vm734 = vcmp.eq.s32.totalorder %v726, %v732
        %vm735 = vcmp.eq.s32.totalorder %v727, %v732
        %vm736 = vcmp.eq.s32.totalorder %v728, %v732
        %v737 = vsel %vm733, %v714, %v575
        %v738 = vsel %vm734, %v715, %v577
        %v739 = vsel %vm735, %v716, %v646
        %v740 = vsel %vm736, %v717, %v648
        %v741 = vmul.f32 %v737, 64.0
        %v742 = vmul.f32 %v738, 64.0
        %v743 = vmul.f32 %v739, 64.0
        %v744 = vmul.f32 %v740, 64.0
        %745 = vst [vmem:[%s188] sm:$0xff] %v741
        %746 = vst [vmem:[%s188 + $0x8] sm:$0xff] %v742
        %747 = vst [vmem:[%s188 + $0x10] sm:$0xff] %v743
        %748 = vst [vmem:[%s188 + $0x18] sm:$0xff] %v744
        %s749 = sand.u32 %s96, 1
        %s750 = scalar_lea.sflag [#allocation4], %s749
        %s751 = sand.u32 %s96, 1
        %s752 = smul.addr %s751, 32
        %s753 = scalar_lea.vmem [#allocation5], %s752
        // Predicated region
        $region37: #{tpu_custom_call.1} parent=31 // pred_check
          %p754 = pneg %p106
        $region38: #{tpu_custom_call.1} parent=31 // pred_check_branch
          %756 = sbr.rel (%p754) target = $region40
        $region39: #{tpu_custom_call.1} parent=31 // pred_region
          %s757 = smul.u32 4, %s20
          %s759 = ssub.s32 512, 512
          %760 = vsyncadd %s750, %s759
          %s761 = smul.addr %s757, 128
          %s762 = scalar_lea.hbm %s3, %s761
          %s764 = sshll.u32 %s753, 4
          %s765 = int_to_ptr.vmem [resolvable:$true] %s764
          %767 = dma.vmem_to_hbm [thread:$0]  %s765, 512, %s762, %s750
        $region40: #{tpu_custom_call.1} parent=31 // pred_fallthru
          _
      $region32: #{tpu_custom_call.1} parent=5 // pred_fallthru
        _
      %p768 = scmp.le.s32.totalorder 2, %s15
      // Predicated region
      $region41: #{tpu_custom_call.1} parent=5 // pred_check
        %p769 = pneg %p768
      $region42: #{tpu_custom_call.1} parent=5 // pred_check_branch
        %771 = sbr.rel (%p769) target = $region44
      $region43: #{tpu_custom_call.1} parent=5 // pred_region
        %s772 = ssub.s32 %s15, 2
        // Predicated region
        $region45: #{tpu_custom_call.1} parent=43 // pred_check
          %p773 = pneg %p112
        $region46: #{tpu_custom_call.1} parent=43 // pred_check_branch
          %775 = sbr.rel (%p773) target = $region48
        $region47: #{tpu_custom_call.1} parent=43 // pred_region
          %s776 = sand.u32 %s97, 1
          %s777 = scalar_lea.sflag [#allocation4], %s776
          %s778 = sand.u32 %s97, 1
          %s779 = smul.addr %s778, 32
          %s780 = scalar_lea.vmem [#allocation5], %s779
          %781 = dma.done %s777, 512
        $region48: #{tpu_custom_call.1} parent=43 // pred_fallthru
          _
      $region44: #{tpu_custom_call.1} parent=5 // pred_fallthru
        _
    $region6: #{tpu_custom_call.1} parent=1 // loop_footer
      %s19 = sadd.s32 1, %s15
    $region7: #{tpu_custom_call.1} parent=1 // loop_footer_branch
      %14 = sbr.rel target = $region3
    $region8: #{tpu_custom_call.1} parent=1 // loop_exit
      _
    %782 = vsyncpa [#allocation3], 1
    %s783 = scalar_lea.sflag [#allocation3], 1
    %784 = vsyncpa %s783, 1
    %785 = vsyncpa [#allocation4], 1
    %s786 = scalar_lea.sflag [#allocation4], 1
    %787 = vsyncpa %s786, 1

</llo_original>
